<compile_context>
chip_gen: v5e
topology: v5e:2x2
jax: 0.10.0
libtpu: 0.0.40
codegen_flags: <defaults>
</compile_context>

<pallas_src>
import functools
import math

import jax
import jax.numpy as jnp
from jax.experimental import pallas as pl
from jax.experimental.pallas import tpu as pltpu

DROPOUT = 0.2
# drop iff uniform_u32 < DROPOUT * 2**32
_DROP_THRESHOLD = int(DROPOUT * 4294967296.0)  # 858993459
_INV_KEEP = 1.0 / (1.0 - DROPOUT)


def _round_up(x, m):
    return (x + m - 1) // m * m


def _ffn_kernel(*refs, apply_dropout: bool):
    if apply_dropout:
        x_ref, w1_ref, b1_ref, w2_ref, b2_ref, bits_ref, o_ref = refs
    else:
        x_ref, w1_ref, b1_ref, w2_ref, b2_ref, o_ref = refs
        bits_ref = None

    # hidden = relu(x @ W1 + b1)   (bf16 MXU inputs, f32 accumulation)
    h = jnp.dot(x_ref[...], w1_ref[...], preferred_element_type=jnp.float32)
    h = jnp.maximum(h + b1_ref[...], 0.0)

    # out = h @ W2 + b2
    out = jnp.dot(h.astype(w2_ref.dtype), w2_ref[...],
                  preferred_element_type=jnp.float32)
    out = out + b2_ref[...]

    if apply_dropout:
        # Inverted dropout, fused to one select + one multiply.
        keep = bits_ref[...] >= jnp.uint32(_DROP_THRESHOLD)
        scale = jnp.where(keep, jnp.float32(_INV_KEEP), jnp.float32(0.0))
        out = out * scale

    o_ref[...] = out.astype(o_ref.dtype)


def feed_forward(x, w1, b1, w2, b2, *, key=None, training=True, tm=256):
    """x: [B, T, D] float32. Returns [B, T, D] float32."""
    B, T, D = x.shape
    H = w1.shape[1]
    M = B * T

    # Lane-dense / sublane-aligned padded sizes.
    Dp = _round_up(D, 128)
    Hp = _round_up(H, 128)
    tm = max(8, min(tm, _round_up(M, 8)))
    Mp = _round_up(M, tm)

    # Pad + cast. bf16 inputs for the MXU (f32 accumulation in-kernel);
    # zero-padding keeps the valid region numerically identical.
    x2 = jnp.pad(x.reshape(M, D), ((0, Mp - M), (0, Dp - D))).astype(jnp.bfloat16)
    w1p = jnp.pad(w1, ((0, Dp - D), (0, Hp - H))).astype(jnp.bfloat16)
    w2p = jnp.pad(w2, ((0, Hp - H), (0, Dp - D))).astype(jnp.bfloat16)
    b1p = jnp.pad(b1, (0, Hp - H)).reshape(1, Hp).astype(jnp.float32)
    b2p = jnp.pad(b2, (0, Dp - D)).reshape(1, Dp).astype(jnp.float32)

    row_spec = pl.BlockSpec((tm, Dp), lambda i: (i, 0))
    in_specs = [
        row_spec,                                   # x tile
        pl.BlockSpec((Dp, Hp), lambda i: (0, 0)),   # W1 (VMEM-resident)
        pl.BlockSpec((1, Hp), lambda i: (0, 0)),    # b1
        pl.BlockSpec((Hp, Dp), lambda i: (0, 0)),   # W2 (VMEM-resident)
        pl.BlockSpec((1, Dp), lambda i: (0, 0)),    # b2
    ]
    inputs = [x2, w1p, b1p, w2p, b2p]

    if training:
        if key is None:
            key = jax.random.PRNGKey(0)
        bits = jax.random.bits(key, (Mp, Dp), dtype=jnp.uint32)
        in_specs.append(pl.BlockSpec((tm, Dp), lambda i: (i, 0)))
        inputs.append(bits)

    flops = 2 * Mp * (Dp * Hp + Hp * Dp)
    bytes_accessed = (x2.size * 2 + w1p.size * 2 + w2p.size * 2
                      + b1p.size * 4 + b2p.size * 4 + Mp * Dp * 4
                      + (Mp * Dp * 4 if training else 0))

    kernel = functools.partial(_ffn_kernel, apply_dropout=training)

    # TODO(synk): for production D/H on v7x (64 MiB VMEM), block the reduction
    # over H with an accumulator scratch instead of keeping full W1/W2 resident.
    out2 = pl.pallas_call(
        kernel,
        out_shape=jax.ShapeDtypeStruct((Mp, Dp), jnp.float32),
        grid_spec=pltpu.PrefetchScalarGridSpec(
            num_scalar_prefetch=0,
            grid=(Mp // tm,),
            in_specs=in_specs,
            out_specs=row_spec,
        ),
        compiler_params=pltpu.CompilerParams(
            dimension_semantics=("parallel",),
            vmem_limit_bytes=48 * 1024 * 1024),
        cost_estimate=pl.CostEstimate(
            flops=flops, transcendentals=0, bytes_accessed=bytes_accessed),
    )(*inputs)

    return out2[:M, :D].reshape(B, T, D)


def init_params(key, n_emb):
    """Deterministic init mirroring torch.nn.Linear defaults
    (uniform(-1/sqrt(fan_in), 1/sqrt(fan_in)))."""
    hidden = 4 * n_emb
    k1, k2, k3, k4 = jax.random.split(key, 4)
    bound1 = 1.0 / math.sqrt(n_emb)
    bound2 = 1.0 / math.sqrt(hidden)
    w1 = jax.random.uniform(k1, (n_emb, hidden), jnp.float32, -bound1, bound1)
    b1 = jax.random.uniform(k2, (hidden,), jnp.float32, -bound1, bound1)
    w2 = jax.random.uniform(k3, (hidden, n_emb), jnp.float32, -bound2, bound2)
    b2 = jax.random.uniform(k4, (n_emb,), jnp.float32, -bound2, bound2)
    return w1, b1, w2, b2


if __name__ == "__main__":
    key = jax.random.PRNGKey(0)
    k_x, k_p, k_drop = jax.random.split(key, 3)

    B, T, n_emb = 2, 8, 32  # small shapes; hidden = 128
    x = jax.random.normal(k_x, (B, T, n_emb), jnp.float32)
    w1, b1, w2, b2 = init_params(k_p, n_emb)

    # Train mode (with dropout), matching the torch module's default state.
    out_train = feed_forward(x, w1, b1, w2, b2, key=k_drop, training=True)
    out_train = jax.block_until_ready(out_train)
    assert out_train.shape == (B, T, n_emb)
    assert bool(jnp.all(jnp.isfinite(out_train)))

    # Eval mode (dropout = identity); check against a bf16/f32-accum reference.
    out_eval = feed_forward(x, w1, b1, w2, b2, training=False)
    out_eval = jax.block_until_ready(out_eval)

    xb = x.reshape(-1, n_emb).astype(jnp.bfloat16)
    h_ref = jnp.maximum(
        jnp.dot(xb, w1.astype(jnp.bfloat16),
                preferred_element_type=jnp.float32) + b1, 0.0)
    ref = (jnp.dot(h_ref.astype(jnp.bfloat16), w2.astype(jnp.bfloat16),
                   preferred_element_type=jnp.float32) + b2).reshape(B, T, n_emb)
    assert jnp.allclose(out_eval, ref, atol=1e-2, rtol=1e-2)

    print("KERNEL_OK")
</pallas_src>

<mosaic_0001>
module attributes {stable_mosaic.version = 11 : i64} {
  func.func @_ffn_kernel(%arg0: i32, %arg1: memref<16x128xbf16, #tpu.memory_space<vmem>>, %arg2: memref<128x128xbf16, #tpu.memory_space<vmem>>, %arg3: memref<1x128xf32, #tpu.memory_space<vmem>>, %arg4: memref<128x128xbf16, #tpu.memory_space<vmem>>, %arg5: memref<1x128xf32, #tpu.memory_space<vmem>>, %arg6: memref<16x128xi32, #tpu.memory_space<vmem>>, %arg7: memref<16x128xf32, #tpu.memory_space<vmem>>) attributes {dimension_semantics = [#tpu.dimension_semantics<parallel>], iteration_bounds = array<i64: 1>, scalar_prefetch = 0 : i64, scratch_operands = 0 : i64, tpu.core_type = #tpu.core_type<tc>, window_params = [{transform_indices = @transform_0, window_bounds = array<i64: 16, 128>}, {pipeline_mode = #tpu.pipeline_mode<synchronous>, transform_indices = @transform_1, window_bounds = array<i64: 128, 128>}, {pipeline_mode = #tpu.pipeline_mode<synchronous>, transform_indices = @transform_2, window_bounds = array<i64: 1, 128>}, {pipeline_mode = #tpu.pipeline_mode<synchronous>, transform_indices = @transform_3, window_bounds = array<i64: 128, 128>}, {pipeline_mode = #tpu.pipeline_mode<synchronous>, transform_indices = @transform_4, window_bounds = array<i64: 1, 128>}, {transform_indices = @transform_5, window_bounds = array<i64: 16, 128>}, {transform_indices = @transform_6, window_bounds = array<i64: 16, 128>}]} {
    %c0 = arith.constant 0 : index
    %c0_0 = arith.constant 0 : index
    %0 = vector.load %arg1[%c0, %c0_0] : memref<16x128xbf16, #tpu.memory_space<vmem>>, vector<16x128xbf16>
    %c0_1 = arith.constant 0 : index
    %c0_2 = arith.constant 0 : index
    %1 = vector.load %arg2[%c0_1, %c0_2] : memref<128x128xbf16, #tpu.memory_space<vmem>>, vector<128x128xbf16>
    %cst = arith.constant dense<0.000000e+00> : vector<16x128xf32>
    %2 = tpu.matmul %0, %1, %cst {dimension_numbers = #tpu.dot_dimension_numbers<[1], [0], [0], [1], [0, 0, 1, 1], [], []>} : vector<16x128xbf16>, vector<128x128xbf16>, vector<16x128xf32> -> vector<16x128xf32>
    %c0_3 = arith.constant 0 : index
    %c0_4 = arith.constant 0 : index
    %3 = vector.load %arg3[%c0_3, %c0_4] : memref<1x128xf32, #tpu.memory_space<vmem>>, vector<1x128xf32>
    %4 = vector.broadcast %3 : vector<1x128xf32> to vector<16x128xf32>
    %5 = arith.addf %2, %4 : vector<16x128xf32>
    %cst_5 = arith.constant 0.000000e+00 : f32
    %6 = vector.broadcast %cst_5 : f32 to vector<16x128xf32>
    %7 = arith.maximumf %5, %6 : vector<16x128xf32>
    %8 = arith.truncf %7 : vector<16x128xf32> to vector<16x128xbf16>
    %c0_6 = arith.constant 0 : index
    %c0_7 = arith.constant 0 : index
    %9 = vector.load %arg4[%c0_6, %c0_7] : memref<128x128xbf16, #tpu.memory_space<vmem>>, vector<128x128xbf16>
    %cst_8 = arith.constant dense<0.000000e+00> : vector<16x128xf32>
    %10 = tpu.matmul %8, %9, %cst_8 {dimension_numbers = #tpu.dot_dimension_numbers<[1], [0], [0], [1], [0, 0, 1, 1], [], []>} : vector<16x128xbf16>, vector<128x128xbf16>, vector<16x128xf32> -> vector<16x128xf32>
    %c0_9 = arith.constant 0 : index
    %c0_10 = arith.constant 0 : index
    %11 = vector.load %arg5[%c0_9, %c0_10] : memref<1x128xf32, #tpu.memory_space<vmem>>, vector<1x128xf32>
    %12 = vector.broadcast %11 : vector<1x128xf32> to vector<16x128xf32>
    %13 = arith.addf %10, %12 : vector<16x128xf32>
    %c0_11 = arith.constant 0 : index
    %c0_12 = arith.constant 0 : index
    %14 = vector.load %arg6[%c0_11, %c0_12] : memref<16x128xi32, #tpu.memory_space<vmem>>, vector<16x128xi32>
    %c858993459_i32 = arith.constant 858993459 : i32
    %15 = vector.broadcast %c858993459_i32 : i32 to vector<16x128xi32>
    %16 = arith.cmpi uge, %14, %15 : vector<16x128xi32>
    %cst_13 = arith.constant 1.250000e+00 : f32
    %cst_14 = arith.constant 0.000000e+00 : f32
    %17 = vector.broadcast %cst_13 : f32 to vector<16x128xf32>
    %18 = vector.broadcast %cst_14 : f32 to vector<16x128xf32>
    %19 = arith.select %16, %17, %18 : vector<16x128xi1>, vector<16x128xf32>
    %20 = arith.mulf %13, %19 : vector<16x128xf32>
    %c0_15 = arith.constant 0 : index
    %c0_16 = arith.constant 0 : index
    %21 = vector.load %arg7[%c0_15, %c0_16] : memref<16x128xf32, #tpu.memory_space<vmem>>, vector<16x128xf32>
    tpu.vector_store %arg7[%c0_15, %c0_16], %20 {strides = array<i32>} : memref<16x128xf32, #tpu.memory_space<vmem>>, vector<16x128xf32>,
    return
  }
  func.func @transform_0(%arg0: i32) -> (i32, i32) {
    %c0_i32 = arith.constant 0 : i32
    %c0_i32_0 = arith.constant 0 : i32
    return %arg0, %c0_i32 : i32, i32
  }
  func.func @transform_1(%arg0: i32) -> (i32, i32) {
    %c0_i32 = arith.constant 0 : i32
    %c0_i32_0 = arith.constant 0 : i32
    %c0_i32_1 = arith.constant 0 : i32
    return %c0_i32, %c0_i32_0 : i32, i32
  }
  func.func @transform_2(%arg0: i32) -> (i32, i32) {
    %c0_i32 = arith.constant 0 : i32
    %c0_i32_0 = arith.constant 0 : i32
    %c0_i32_1 = arith.constant 0 : i32
    return %c0_i32, %c0_i32_0 : i32, i32
  }
  func.func @transform_3(%arg0: i32) -> (i32, i32) {
    %c0_i32 = arith.constant 0 : i32
    %c0_i32_0 = arith.constant 0 : i32
    %c0_i32_1 = arith.constant 0 : i32
    return %c0_i32, %c0_i32_0 : i32, i32
  }
  func.func @transform_4(%arg0: i32) -> (i32, i32) {
    %c0_i32 = arith.constant 0 : i32
    %c0_i32_0 = arith.constant 0 : i32
    %c0_i32_1 = arith.constant 0 : i32
    return %c0_i32, %c0_i32_0 : i32, i32
  }
  func.func @transform_5(%arg0: i32) -> (i32, i32) {
    %c0_i32 = arith.constant 0 : i32
    %c0_i32_0 = arith.constant 0 : i32
    return %arg0, %c0_i32 : i32, i32
  }
  func.func @transform_6(%arg0: i32) -> (i32, i32) {
    %c0_i32 = arith.constant 0 : i32
    %c0_i32_0 = arith.constant 0 : i32
    return %arg0, %c0_i32 : i32, i32
  }
}

</mosaic_0001>

<llo_original>
// kernel: tpu_custom_call.1
$region0: #{tpu_custom_call.1}
  #allocation0 [shape = 'u32[]', space=smem, size = 0x4, offset = 0x4, fixed_abs, tag = 'smem constant byte address 0x4 - core index']
  #allocation1 [shape = 'u32[72,128]{1,0:T(1,128)}', space=vmem, size = 0x9000, scoped, tag = 'internal scratch']
  %s0 = inlined_call_operand.hbm [shape: bf16[16,128], index: 0, kind: input, shape index: {}]
  %s1 = inlined_call_operand.hbm [shape: bf16[128,128], index: 1, kind: input, shape index: {}]
  %s2 = inlined_call_operand.vmem [shape: f32[1,128], index: 2, kind: input, shape index: {}]
  %s3 = inlined_call_operand.hbm [shape: bf16[128,128], index: 3, kind: input, shape index: {}]
  %s4 = inlined_call_operand.vmem [shape: f32[1,128], index: 4, kind: input, shape index: {}]
  %s5 = inlined_call_operand.hbm [shape: u32[16,128], index: 5, kind: input, shape index: {}]
  %s6 = inlined_call_operand.hbm [shape: f32[16,128], index: 6, kind: output, shape index: {}]
  %s7 = sld [smem:[#allocation0]]
  $region50: #{tpu_custom_call.1} parent=0
    _
  %s9 = ssub.s32 1, %s7
  %s10 = scalar_select 0, %s9, %s7
  $region1: #{tpu_custom_call.1} parent=0
    #allocation2 [shape = 'u8[4096]{0}', space=vmem, size = 0x1000, scoped, tag = 'input window, operand 0, single buffered']
    #allocation3 [shape = 's32[1]{0}', space=sflag, size = 0x4, scoped, tag = 'scoped memory for tpu_custom_call.1']
    #allocation4 [shape = 's32[1]{0}', space=sflag, size = 0x4, scoped, tag = 'scoped memory for tpu_custom_call.1']
    #allocation5 [shape = 'u8[32768]{0}', space=vmem, size = 0x8000, scoped, tag = 'input window, operand 1, single buffered']
    #allocation6 [shape = 's32[1]{0}', space=sflag, size = 0x4, scoped, tag = 'scoped memory for tpu_custom_call.1']
    #allocation7 [shape = 'u8[32768]{0}', space=vmem, size = 0x8000, scoped, tag = 'input window, operand 3, single buffered']
    #allocation8 [shape = 'u8[8192]{0}', space=vmem, size = 0x2000, scoped, tag = 'input window, operand 5, single buffered']
    #allocation9 [shape = 's32[1]{0}', space=sflag, size = 0x4, scoped, tag = 'scoped memory for tpu_custom_call.1']
    #allocation10 [shape = 'u8[8192]{0}', space=vmem, size = 0x2000, scoped, tag = 'output window, operand 0, single buffered']
    %11 = vsyncpa [#allocation3], 0
    %12 = vsyncpa [#allocation6], 0
    %13 = vsyncpa [#allocation9], 0
    %14 = vsyncpa [#allocation4], 0
    // Predicated region
    $region2: #{tpu_custom_call.1} parent=1 // pred_check
      _
    $region3: #{tpu_custom_call.1} parent=1 // pred_check_branch
      %16 = sbr.rel (0) target = $region5
    $region4: #{tpu_custom_call.1} parent=1 // pred_region
      %18 = vsyncadd [#allocation3], 0
      %s19 = sshll.u32 %s0, 4
      %s20 = int_to_ptr.hbm [resolvable:$true] %s19
      %s21 = sshll.u32 [#allocation2], 4
      %s22 = int_to_ptr.vmem [resolvable:$true] %s21
      %27 = dma.hbm_to_vmem [thread:$0]  %s20, 128, %s22, [#allocation3], 64, 64, 4
    $region5: #{tpu_custom_call.1} parent=1 // pred_fallthru
      _
    // Predicated region
    $region6: #{tpu_custom_call.1} parent=1 // pred_check
      _
    $region7: #{tpu_custom_call.1} parent=1 // pred_check_branch
      %29 = sbr.rel (0) target = $region9
    $region8: #{tpu_custom_call.1} parent=1 // pred_region
      %31 = vsyncadd [#allocation6], 0
      %s32 = sshll.u32 %s1, 4
      %s33 = int_to_ptr.hbm [resolvable:$true] %s32
      %s34 = sshll.u32 [#allocation5], 4
      %s35 = int_to_ptr.vmem [resolvable:$true] %s34
      %40 = dma.hbm_to_vmem [thread:$0]  %s33, 1024, %s35, [#allocation6], 64, 64, 4
    $region9: #{tpu_custom_call.1} parent=1 // pred_fallthru
      _
    // Predicated region
    $region10: #{tpu_custom_call.1} parent=1 // pred_check
      _
    $region11: #{tpu_custom_call.1} parent=1 // pred_check_branch
      %42 = sbr.rel (0) target = $region13
    $region12: #{tpu_custom_call.1} parent=1 // pred_region
      _
    $region13: #{tpu_custom_call.1} parent=1 // pred_fallthru
      _
    // Predicated region
    $region14: #{tpu_custom_call.1} parent=1 // pred_check
      _
    $region15: #{tpu_custom_call.1} parent=1 // pred_check_branch
      %44 = sbr.rel (0) target = $region17
    $region16: #{tpu_custom_call.1} parent=1 // pred_region
      %46 = vsyncadd [#allocation6], 0
      %s47 = sshll.u32 %s3, 4
      %s48 = int_to_ptr.hbm [resolvable:$true] %s47
      %s49 = sshll.u32 [#allocation7], 4
      %s50 = int_to_ptr.vmem [resolvable:$true] %s49
      %55 = dma.hbm_to_vmem [thread:$0]  %s48, 1024, %s50, [#allocation6], 64, 64, 4
    $region17: #{tpu_custom_call.1} parent=1 // pred_fallthru
      _
    // Predicated region
    $region18: #{tpu_custom_call.1} parent=1 // pred_check
      _
    $region19: #{tpu_custom_call.1} parent=1 // pred_check_branch
      %57 = sbr.rel (0) target = $region21
    $region20: #{tpu_custom_call.1} parent=1 // pred_region
      _
    $region21: #{tpu_custom_call.1} parent=1 // pred_fallthru
      _
    // Predicated region
    $region22: #{tpu_custom_call.1} parent=1 // pred_check
      _
    $region23: #{tpu_custom_call.1} parent=1 // pred_check_branch
      %59 = sbr.rel (0) target = $region25
    $region24: #{tpu_custom_call.1} parent=1 // pred_region
      %61 = vsyncadd [#allocation9], 0
      %s62 = sshll.u32 %s5, 4
      %s63 = int_to_ptr.hbm [resolvable:$true] %s62
      %s64 = sshll.u32 [#allocation8], 4
      %s65 = int_to_ptr.vmem [resolvable:$true] %s64
      %70 = dma.hbm_to_vmem [thread:$0]  %s63, 256, %s65, [#allocation9], 128, 128, 8
    $region25: #{tpu_custom_call.1} parent=1 // pred_fallthru
      _
    // Predicated region
    $region26: #{tpu_custom_call.1} parent=1 // pred_check
      _
    $region27: #{tpu_custom_call.1} parent=1 // pred_check_branch
      %72 = sbr.rel (0) target = $region29
    $region28: #{tpu_custom_call.1} parent=1 // pred_region
      %74 = dma.done [#allocation3], 128
    $region29: #{tpu_custom_call.1} parent=1 // pred_fallthru
      _
    // Predicated region
    $region30: #{tpu_custom_call.1} parent=1 // pred_check
      _
    $region31: #{tpu_custom_call.1} parent=1 // pred_check_branch
      %76 = sbr.rel (0) target = $region33
    $region32: #{tpu_custom_call.1} parent=1 // pred_region
      %78 = dma.done [#allocation6], 1024
    $region33: #{tpu_custom_call.1} parent=1 // pred_fallthru
      _
    // Predicated region
    $region34: #{tpu_custom_call.1} parent=1 // pred_check
      _
    $region35: #{tpu_custom_call.1} parent=1 // pred_check_branch
      %80 = sbr.rel (0) target = $region37
    $region36: #{tpu_custom_call.1} parent=1 // pred_region
      %82 = dma.done [#allocation6], 1024
    $region37: #{tpu_custom_call.1} parent=1 // pred_fallthru
      _
    // Predicated region
    $region38: #{tpu_custom_call.1} parent=1 // pred_check
      _
    $region39: #{tpu_custom_call.1} parent=1 // pred_check_branch
      %84 = sbr.rel (0) target = $region41
    $region40: #{tpu_custom_call.1} parent=1 // pred_region
      %86 = dma.done [#allocation9], 256
    $region41: #{tpu_custom_call.1} parent=1 // pred_fallthru
      _
    %v87 = vld [vmem:[#allocation2] sm:$0xf]
    %v88 = vld [vmem:[#allocation2 + $0x4] sm:$0xf]
    %v89 = vld [vmem:[#allocation5] sm:$0xf]
    %v90 = vld [vmem:[#allocation5 + $0x4] sm:$0xf]
    %v91 = vld [vmem:[#allocation5 + $0x8] sm:$0xf]
    %v92 = vld [vmem:[#allocation5 + $0xc] sm:$0xf]
    %v93 = vld [vmem:[#allocation5 + $0x10] sm:$0xf]
    %v94 = vld [vmem:[#allocation5 + $0x14] sm:$0xf]
    %v95 = vld [vmem:[#allocation5 + $0x18] sm:$0xf]
    %v96 = vld [vmem:[#allocation5 + $0x1c] sm:$0xf]
    %v97 = vld [vmem:[#allocation5 + $0x20] sm:$0xf]
    %v98 = vld [vmem:[#allocation5 + $0x24] sm:$0xf]
    %v99 = vld [vmem:[#allocation5 + $0x28] sm:$0xf]
    %v100 = vld [vmem:[#allocation5 + $0x2c] sm:$0xf]
    %v101 = vld [vmem:[#allocation5 + $0x30] sm:$0xf]
    %v102 = vld [vmem:[#allocation5 + $0x34] sm:$0xf]
    %v103 = vld [vmem:[#allocation5 + $0x38] sm:$0xf]
    %v104 = vld [vmem:[#allocation5 + $0x3c] sm:$0xf]
    %v105 = vld [vmem:[%s2] sm:$0x1]
    %v107 = vperm.slane %v105, 0
    %v111 = vunpack.c.l.b16 %v87
    %v112 = vunpack.c.l.b16 %v88
    %v113 = vpack.c.b16 %v112, %v111
    %v131 = vunpack.c.l.b16 %v89
    %v132 = vunpack.c.l.b16 %v90
    %v133 = vunpack.c.l.b16 %v91
    %v134 = vunpack.c.l.b16 %v92
    %v135 = vunpack.c.l.b16 %v93
    %v136 = vunpack.c.l.b16 %v94
    %v137 = vunpack.c.l.b16 %v95
    %v138 = vunpack.c.l.b16 %v96
    %v139 = vunpack.c.l.b16 %v97
    %v140 = vunpack.c.l.b16 %v98
    %v141 = vunpack.c.l.b16 %v99
    %v142 = vunpack.c.l.b16 %v100
    %v143 = vunpack.c.l.b16 %v101
    %v144 = vunpack.c.l.b16 %v102
    %v145 = vunpack.c.l.b16 %v103
    %v146 = vunpack.c.l.b16 %v104
    %v147 = vpack.c.b16 %v132, %v131
    %v148 = vpack.c.b16 %v134, %v133
    %v149 = vpack.c.b16 %v136, %v135
    %v150 = vpack.c.b16 %v138, %v137
    %v151 = vpack.c.b16 %v140, %v139
    %v152 = vpack.c.b16 %v142, %v141
    %v153 = vpack.c.b16 %v144, %v143
    %v154 = vpack.c.b16 %v146, %v145
    %163 = vmatpush.bf16.msra.mxu0 %v154
    %164 = vmatpush.bf16.msra.mxu0 %v153
    %165 = vmatpush.bf16.msra.mxu0 %v152
    %166 = vmatpush.bf16.msra.mxu0 %v151
    %167 = vmatpush.bf16.msra.mxu0 %v150
    %168 = vmatpush.bf16.msra.mxu0 %v149
    %169 = vmatpush.bf16.msra.mxu0 %v148
    %170 = vmatpush.bf16.msra.mxu0 %v147
    %171 = vmatmul.bf16.gmra.mxu0 %v113
    %v172 = vpop.f32.mrf.mxu0
    %v173 = vadd.f32 %v107, %v172
    %v174 = vpop.f32.mrf.mxu0
    %v175 = vadd.f32 %v107, %v174
    %176 = vdwg.mxu0
    %v177 = vmax.f32 %v173, 0.0
    %v178 = vmax.f32 %v175, 0.0
    %v179 = vpack.c.bf16 %v178, %v177
    %v180 = vld [vmem:[#allocation7] sm:$0xf]
    %v181 = vld [vmem:[#allocation7 + $0x4] sm:$0xf]
    %v182 = vld [vmem:[#allocation7 + $0x8] sm:$0xf]
    %v183 = vld [vmem:[#allocation7 + $0xc] sm:$0xf]
    %v184 = vld [vmem:[#allocation7 + $0x10] sm:$0xf]
    %v185 = vld [vmem:[#allocation7 + $0x14] sm:$0xf]
    %v186 = vld [vmem:[#allocation7 + $0x18] sm:$0xf]
    %v187 = vld [vmem:[#allocation7 + $0x1c] sm:$0xf]
    %v188 = vld [vmem:[#allocation7 + $0x20] sm:$0xf]
    %v189 = vld [vmem:[#allocation7 + $0x24] sm:$0xf]
    %v190 = vld [vmem:[#allocation7 + $0x28] sm:$0xf]
    %v191 = vld [vmem:[#allocation7 + $0x2c] sm:$0xf]
    %v192 = vld [vmem:[#allocation7 + $0x30] sm:$0xf]
    %v193 = vld [vmem:[#allocation7 + $0x34] sm:$0xf]
    %v194 = vld [vmem:[#allocation7 + $0x38] sm:$0xf]
    %v195 = vld [vmem:[#allocation7 + $0x3c] sm:$0xf]
    %v196 = vld [vmem:[%s4] sm:$0x1]
    %v198 = vperm.slane %v196, 0
    %v216 = vunpack.c.l.b16 %v180
    %v217 = vunpack.c.l.b16 %v181
    %v218 = vunpack.c.l.b16 %v182
    %v219 = vunpack.c.l.b16 %v183
    %v220 = vunpack.c.l.b16 %v184
    %v221 = vunpack.c.l.b16 %v185
    %v222 = vunpack.c.l.b16 %v186
    %v223 = vunpack.c.l.b16 %v187
    %v224 = vunpack.c.l.b16 %v188
    %v225 = vunpack.c.l.b16 %v189
    %v226 = vunpack.c.l.b16 %v190
    %v227 = vunpack.c.l.b16 %v191
    %v228 = vunpack.c.l.b16 %v192
    %v229 = vunpack.c.l.b16 %v193
    %v230 = vunpack.c.l.b16 %v194
    %v231 = vunpack.c.l.b16 %v195
    %v232 = vpack.c.b16 %v217, %v216
    %v233 = vpack.c.b16 %v219, %v218
    %v234 = vpack.c.b16 %v221, %v220
    %v235 = vpack.c.b16 %v223, %v222
    %v236 = vpack.c.b16 %v225, %v224
    %v237 = vpack.c.b16 %v227, %v226
    %v238 = vpack.c.b16 %v229, %v228
    %v239 = vpack.c.b16 %v231, %v230
    %248 = vmatpush.bf16.msra.mxu0 %v239
    %249 = vmatpush.bf16.msra.mxu0 %v238
    %250 = vmatpush.bf16.msra.mxu0 %v237
    %251 = vmatpush.bf16.msra.mxu0 %v236
    %252 = vmatpush.bf16.msra.mxu0 %v235
    %253 = vmatpush.bf16.msra.mxu0 %v234
    %254 = vmatpush.bf16.msra.mxu0 %v233
    %255 = vmatpush.bf16.msra.mxu0 %v232
    %256 = vmatmul.bf16.gmra.mxu0 %v179
    %v257 = vpop.f32.mrf.mxu0
    %v258 = vadd.f32 %v198, %v257
    %v259 = vpop.f32.mrf.mxu0
    %v260 = vadd.f32 %v198, %v259
    %261 = vdwg.mxu0
    %v262 = vld [vmem:[#allocation8] sm:$0xff]
    %v263 = vld [vmem:[#allocation8 + $0x8] sm:$0xff]
    %v264 = vadd.s32 %v262, 2147483648
    %vm266 = vcmp.ge.s32.totalorder %v264, 3006477107
    %v267 = vadd.s32 %v263, 2147483648
    %vm269 = vcmp.ge.s32.totalorder %v267, 3006477107
    %v270 = vsel %vm266, 1.25, 0.0
    %v271 = vsel %vm269, 1.25, 0.0
    %v272 = vmul.f32 %v258, %v270
    %v273 = vmul.f32 %v260, %v271
    %274 = vst [vmem:[#allocation10] sm:$0xff] %v272
    %275 = vst [vmem:[#allocation10 + $0x8] sm:$0xff] %v273
    // Predicated region
    $region42: #{tpu_custom_call.1} parent=1 // pred_check
      _
    $region43: #{tpu_custom_call.1} parent=1 // pred_check_branch
      %277 = sbr.rel (0) target = $region45
    $region44: #{tpu_custom_call.1} parent=1 // pred_region
      %279 = vsyncadd [#allocation4], 0
      %s280 = sshll.u32 [#allocation10], 4
      %s281 = int_to_ptr.vmem [resolvable:$true] %s280
      %s282 = sshll.u32 %s6, 4
      %s283 = int_to_ptr.hbm [resolvable:$true] %s282
      %288 = dma.vmem_to_hbm [thread:$0]  %s281, 256, %s283, [#allocation4], 128, 128, 8
    $region45: #{tpu_custom_call.1} parent=1 // pred_fallthru
      _
    // Predicated region
    $region46: #{tpu_custom_call.1} parent=1 // pred_check
      _
    $region47: #{tpu_custom_call.1} parent=1 // pred_check_branch
      %290 = sbr.rel (0) target = $region49
    $region48: #{tpu_custom_call.1} parent=1 // pred_region
      %292 = dma.done [#allocation4], 256
    $region49: #{tpu_custom_call.1} parent=1 // pred_fallthru
      _
    %293 = vsyncpa [#allocation3], 1
    %294 = vsyncpa [#allocation6], 1
    %295 = vsyncpa [#allocation9], 1
    %296 = vsyncpa [#allocation4], 1

</llo_original>
